<compile_context>
chip_gen: v7x
topology: tpu7x:2x2x1
jax: 0.10.0
libtpu: 0.0.40
codegen_flags: <defaults>
</compile_context>

<pallas_src>
import jax
import jax.numpy as jnp
from jax import lax
from jax.experimental import pallas as pl
from jax.experimental.pallas import tpu as pltpu

# ---- small synthetic sizes consistent with the module's forward ----
S = 2        # Sepformer-whamr separates into 2 sources
B = 1        # mixture.unsqueeze(0) -> batch of 1 per source
T = 8        # WavLM frames (synthetic, small)
H = 256      # wavlm hidden_size stand-in (lane aligned)
E = 256      # EMBEDDING_DIM
R = 2        # number of reference speaker embeddings

OUT_ROWS = 8     # padded output tile rows (>= N = S*B)
OUT_COLS = 128   # padded output tile lanes

LN_EPS = 1e-5      # nn.LayerNorm default eps
L2_EPS = 1e-12     # F.normalize default eps
COS_EPS = 1e-8     # F.cosine_similarity default eps
PRELU_INIT = 0.25  # nn.PReLU default init


def _full_spec(shape):
    nd = len(shape)
    return pl.BlockSpec(shape, lambda i, _nd=nd: (0,) * _nd)


_SMEM_SPEC = pl.BlockSpec(memory_space=pltpu.MemorySpace.SMEM)


# ---------------------------------------------------------------------------
# Fused kernel: EmbeddingExtractor + F.normalize + cosine similarity + argmax
#   feat_ref : [N, T, H] f32    features (stand-in for WavLM last_hidden_state)
#   w_ref    : [H, 2H+E] f32    packed weights  (w1 | w3 | w4), columns
#   p_ref    : [8, H]    f32    packed rows: b1, w2, b3, gamma, beta, b4, 0, 0
#   sc_ref   : [2]       f32    SMEM scalars: [b2, prelu_alpha]
#   ref_ref  : [R, E]    f32    reference embeddings
#   out_ref  : [8, 128]  f32    col 0 = best cosine score, col 1 = best index
# ---------------------------------------------------------------------------
def _speaker_head_kernel(feat_ref, w_ref, p_ref, sc_ref, ref_ref, out_ref):
    feat = feat_ref[...]                                        # [N, T, H] f32
    n, t, h = feat.shape

    prm = p_ref[...]                                            # [8, H]
    b1, w2_row, b3 = prm[0:1], prm[1:2], prm[2:3]               # [1, H] each
    gamma, beta, b4 = prm[3:4], prm[4:5], prm[5:6]
    b2 = sc_ref[0]                                              # SMEM scalar
    alpha = sc_ref[1]                                           # SMEM scalar

    # ---- attention_layer: Linear -> Tanh -> Linear(H->1) -> Softmax(dim=1) ----
    f2 = feat.reshape(n * t, h)
    a1 = jnp.tanh(
        jnp.dot(f2, w_ref[:, 0:h], preferred_element_type=jnp.float32) + b1)

    # Linear(H -> 1) as a VPU multiply + lane reduce (kept off the MXU — a
    # K=256 -> 1-column pass is wasteful, esp. on v5e's 128x128 MXU).
    logits = jnp.sum(a1.reshape(n, t, h) * w2_row, axis=-1) + b2     # [N, T]
    m = jnp.max(logits, axis=1, keepdims=True)                       # [N, 1]
    ex = jnp.exp(logits - m)                                         # [N, T]
    attn = ex * pl.reciprocal(jnp.sum(ex, axis=1, keepdims=True),
                              approx=True)                           # [N, T]

    # ---- attention pooling on the MXU: pooled[i] = attn[i] @ feat[i] ----
    # (per-source 2-D dots, statically unrolled over the tiny N; avoids the
    #  lane->sublane relayout of attn.  For large N use a batched dot_general.)
    pooled = jnp.concatenate(
        [jnp.dot(attn[i:i + 1, :], feat[i], preferred_element_type=jnp.float32)
         for i in range(n)], axis=0)                                 # [N, H]

    # ---- projection_layer: Linear -> LayerNorm -> PReLU -> Linear ----
    p1 = jnp.dot(pooled, w_ref[:, h:2 * h],
                 preferred_element_type=jnp.float32) + b3            # [N, H]
    mu = jnp.mean(p1, axis=-1, keepdims=True)
    var = jnp.mean((p1 - mu) ** 2, axis=-1, keepdims=True)
    ln = (p1 - mu) * lax.rsqrt(var + LN_EPS) * gamma + beta
    pr = jnp.where(ln > 0, ln, alpha * ln)                           # PReLU
    emb = jnp.dot(pr, w_ref[:, 2 * h:2 * h + E],
                  preferred_element_type=jnp.float32) + b4           # [N, E]

    # ---- F.normalize(p=2, dim=1): rsqrt + torch's max(||x||, eps) clamp ----
    inv = jnp.minimum(lax.rsqrt(jnp.sum(emb * emb, axis=-1, keepdims=True)),
                      1.0 / L2_EPS)
    emb_n = emb * inv                                                # unit rows

    # ---- F.cosine_similarity against the reference embeddings ----
    # emb_n is already unit-norm, so the source-side eps clamp of
    # cosine_similarity is the identity (differs from torch only for
    # pathologically zero embeddings); only the reference side is normalized.
    ref = ref_ref[...]                                               # [R, E]
    ref_inv = jnp.minimum(lax.rsqrt(jnp.sum(ref * ref, axis=-1, keepdims=True)),
                          1.0 / COS_EPS)
    ref_u = ref * ref_inv
    sim = lax.dot_general(emb_n, ref_u, (((1,), (1,)), ((), ())),
                          preferred_element_type=jnp.float32)        # [N, R]

    # ---- torch.argmax over references + winning score (first max on ties) ----
    mx = jnp.max(sim, axis=1, keepdims=True)                         # [N, 1]
    ridx = lax.broadcasted_iota(jnp.int32, sim.shape, 1)             # [N, R]
    arg = jnp.min(jnp.where(sim >= mx, ridx, sim.shape[1]),
                  axis=1, keepdims=True)                             # [N, 1] i32

    # ---- single lane-dense (8,128) output, full unmasked store ----
    pad = jnp.zeros((OUT_ROWS - n, 1), jnp.float32)
    mx8 = jnp.concatenate([mx, pad], axis=0)                         # [8, 1]
    arg8 = jnp.concatenate([arg.astype(jnp.float32), pad], axis=0)   # [8, 1]
    col = lax.broadcasted_iota(jnp.int32, (OUT_ROWS, OUT_COLS), 1)
    out_ref[...] = jnp.where(col == 0, mx8, jnp.where(col == 1, arg8, 0.0))


def speaker_head(features, reference_embeddings, params):
    """Returns (assignments [N] int32, similarities [N] f32) in one pallas_call."""
    n = features.shape[0]
    args = (features, params["w_slab"], params["p_slab"], params["scalars"],
            reference_embeddings)
    in_specs = [
        _full_spec(features.shape),
        _full_spec(params["w_slab"].shape),
        _full_spec(params["p_slab"].shape),
        _SMEM_SPEC,                                   # [b2, alpha] scalars
        _full_spec(reference_embeddings.shape),
    ]
    out = pl.pallas_call(
        _speaker_head_kernel,
        out_shape=jax.ShapeDtypeStruct((OUT_ROWS, OUT_COLS), jnp.float32),
        grid=(1,),
        in_specs=in_specs,
        out_specs=_full_spec((OUT_ROWS, OUT_COLS)),
        compiler_params=pltpu.CompilerParams(dimension_semantics=("arbitrary",)),
    )(*args)
    similarities = out[:n, 0]
    assignments = out[:n, 1].astype(jnp.int32)
    return assignments, similarities


# ---------------------------------------------------------------------------
# Parameter init (deterministic, synthetic) — EmbeddingExtractor shapes.
# PyTorch Linear weights [out, in] are stored transposed as [in, out] and
# packed:  w_slab = [w1 | w3 | w4]  (one contiguous f32 slab, one DMA),
#          p_slab = rows {b1, w2, b3, gamma, beta, b4} padded to 8 rows,
#          scalars = [b2, prelu_alpha]  (SMEM).
# All f32 to match the f32 PyTorch Linear layers (MXU is idle at these sizes).
# ---------------------------------------------------------------------------
def init_params(key):
    assert E == H, "parameter-slab packing assumes embed_dim == hidden_size"
    ks = jax.random.split(key, 4)
    s = 0.05
    w1 = jax.random.normal(ks[0], (H, H), jnp.float32) * s
    w2 = jax.random.normal(ks[1], (H,), jnp.float32) * s     # Linear(H,1) row
    w3 = jax.random.normal(ks[2], (H, H), jnp.float32) * s
    w4 = jax.random.normal(ks[3], (H, E), jnp.float32) * s
    w_slab = jnp.concatenate([w1, w3, w4], axis=1)           # [H, 2H+E]
    p_slab = jnp.stack([
        jnp.zeros((H,), jnp.float32),   # b1
        w2,                             # w2 (Linear(H,1) weight as a row)
        jnp.zeros((H,), jnp.float32),   # b3
        jnp.ones((H,), jnp.float32),    # LayerNorm gamma
        jnp.zeros((H,), jnp.float32),   # LayerNorm beta
        jnp.zeros((E,), jnp.float32),   # b4
        jnp.zeros((H,), jnp.float32),   # pad row
        jnp.zeros((H,), jnp.float32),   # pad row
    ])                                                        # [8, H]
    scalars = jnp.array([0.0, PRELU_INIT], jnp.float32)       # [b2, alpha]
    return {"w_slab": w_slab, "p_slab": p_slab, "scalars": scalars}


def joint_forward(mixture, features, reference_embeddings, params):
    # TODO(synk): SpeechSeparator (pretrained SpeechBrain Sepformer + 16k<->8k
    # resamplers) has no Pallas equivalent; a deterministic stand-in is returned.
    separated_sources = (jnp.broadcast_to(mixture, (S,) + mixture.shape)
                         * jnp.array([0.6, 0.4], jnp.float32)[:, None])
    # TODO(synk): WavLM backbone + Wav2Vec2FeatureExtractor are pretrained models
    # not reproducible here; `features` stands in for wavlm(...).last_hidden_state.
    assignments, similarities = speaker_head(features, reference_embeddings, params)
    return separated_sources, assignments, similarities


if __name__ == "__main__":
    key = jax.random.PRNGKey(0)
    k_mix, k_feat, k_ref, k_par = jax.random.split(key, 4)

    mixture = jax.random.normal(k_mix, (160,), jnp.float32)            # tiny waveform
    features = jax.random.normal(k_feat, (S * B, T, H), jnp.float32)   # per-source WavLM feats
    reference_embeddings = jax.random.normal(k_ref, (R, E), jnp.float32)

    params = init_params(k_par)

    separated_sources, assignments, similarities = joint_forward(
        mixture, features, reference_embeddings, params)

    jax.block_until_ready((separated_sources, assignments, similarities))
    print("KERNEL_OK")
</pallas_src>

<mosaic_0001>
module attributes {stable_mosaic.version = 11 : i64} {
  func.func @_speaker_head_kernel(%arg0: i32, %arg1: memref<2x8x256xf32, #tpu.memory_space<vmem>>, %arg2: memref<256x768xf32, #tpu.memory_space<vmem>>, %arg3: memref<8x256xf32, #tpu.memory_space<vmem>>, %arg4: memref<2xf32, #tpu.memory_space<smem>>, %arg5: memref<2x256xf32, #tpu.memory_space<vmem>>, %arg6: memref<8x128xf32, #tpu.memory_space<vmem>>) attributes {dimension_semantics = [#tpu.dimension_semantics<arbitrary>], iteration_bounds = array<i64: 1>, scalar_prefetch = 0 : i64, scratch_operands = 0 : i64, tpu.core_type = #tpu.core_type<tc>, window_params = [{pipeline_mode = #tpu.pipeline_mode<synchronous>, transform_indices = @transform_0, window_bounds = array<i64: 2, 8, 256>}, {pipeline_mode = #tpu.pipeline_mode<synchronous>, transform_indices = @transform_1, window_bounds = array<i64: 256, 768>}, {pipeline_mode = #tpu.pipeline_mode<synchronous>, transform_indices = @transform_2, window_bounds = array<i64: 8, 256>}, {transform_indices = @transform_3, window_bounds = array<i64: 2>}, {pipeline_mode = #tpu.pipeline_mode<synchronous>, transform_indices = @transform_4, window_bounds = array<i64: 2, 256>}, {pipeline_mode = #tpu.pipeline_mode<synchronous>, transform_indices = @transform_5, window_bounds = array<i64: 8, 128>}]} {
    %c0 = arith.constant 0 : index
    %c0_0 = arith.constant 0 : index
    %c0_1 = arith.constant 0 : index
    %0 = vector.load %arg1[%c0, %c0_0, %c0_1] : memref<2x8x256xf32, #tpu.memory_space<vmem>>, vector<2x8x256xf32>
    %c0_2 = arith.constant 0 : index
    %c0_3 = arith.constant 0 : index
    %1 = vector.load %arg3[%c0_2, %c0_3] : memref<8x256xf32, #tpu.memory_space<vmem>>, vector<8x256xf32>
    %2 = vector.extract_strided_slice %1 {offsets = [0, 0], sizes = [1, 256], strides = [1, 1]} : vector<8x256xf32> to vector<1x256xf32>
    %3 = vector.extract_strided_slice %1 {offsets = [1, 0], sizes = [1, 256], strides = [1, 1]} : vector<8x256xf32> to vector<1x256xf32>
    %4 = vector.extract_strided_slice %1 {offsets = [2, 0], sizes = [1, 256], strides = [1, 1]} : vector<8x256xf32> to vector<1x256xf32>
    %5 = vector.extract_strided_slice %1 {offsets = [3, 0], sizes = [1, 256], strides = [1, 1]} : vector<8x256xf32> to vector<1x256xf32>
    %6 = vector.extract_strided_slice %1 {offsets = [4, 0], sizes = [1, 256], strides = [1, 1]} : vector<8x256xf32> to vector<1x256xf32>
    %7 = vector.extract_strided_slice %1 {offsets = [5, 0], sizes = [1, 256], strides = [1, 1]} : vector<8x256xf32> to vector<1x256xf32>
    %c0_4 = arith.constant 0 : index
    %8 = memref.load %arg4[%c0_4] : memref<2xf32, #tpu.memory_space<smem>>
    %c1 = arith.constant 1 : index
    %9 = memref.load %arg4[%c1] : memref<2xf32, #tpu.memory_space<smem>>
    %10 = vector.shape_cast %0 : vector<2x8x256xf32> to vector<16x256xf32>
    %c0_5 = arith.constant 0 : index
    %c0_6 = arith.constant 0 : index
    %11 = vector.load %arg2[%c0_5, %c0_6] : memref<256x768xf32, #tpu.memory_space<vmem>>, vector<256x256xf32>
    %cst = arith.constant dense<0.000000e+00> : vector<16x256xf32>
    %12 = tpu.matmul %10, %11, %cst {dimension_numbers = #tpu.dot_dimension_numbers<[1], [0], [0], [1], [0, 0, 1, 1], [], []>} : vector<16x256xf32>, vector<256x256xf32>, vector<16x256xf32> -> vector<16x256xf32>
    %13 = vector.broadcast %2 : vector<1x256xf32> to vector<16x256xf32>
    %14 = arith.addf %12, %13 : vector<16x256xf32>
    %15 = math.tanh %14 : vector<16x256xf32>
    %16 = vector.shape_cast %15 : vector<16x256xf32> to vector<2x8x256xf32>
    %17 = vector.shape_cast %3 : vector<1x256xf32> to vector<1x1x256xf32>
    %18 = vector.broadcast %17 : vector<1x1x256xf32> to vector<2x8x256xf32>
    %19 = arith.mulf %16, %18 : vector<2x8x256xf32>
    %cst_7 = arith.constant dense<0.000000e+00> : vector<2x8xf32>
    %20 = vector.multi_reduction <add>, %19, %cst_7 [2] : vector<2x8x256xf32> to vector<2x8xf32>
    %21 = vector.broadcast %8 : f32 to vector<2x8xf32>
    %22 = arith.addf %20, %21 : vector<2x8xf32>
    %cst_8 = arith.constant dense<0xFF800000> : vector<2xf32>
    %23 = vector.multi_reduction <maximumf>, %22, %cst_8 [1] : vector<2x8xf32> to vector<2xf32>
    %24 = vector.shape_cast %23 : vector<2xf32> to vector<2x1xf32>
    %25 = vector.broadcast %24 : vector<2x1xf32> to vector<2x8xf32>
    %26 = arith.subf %22, %25 : vector<2x8xf32>
    %27 = math.exp %26 : vector<2x8xf32>
    %cst_9 = arith.constant dense<0.000000e+00> : vector<2xf32>
    %28 = vector.multi_reduction <add>, %27, %cst_9 [1] : vector<2x8xf32> to vector<2xf32>
    %29 = vector.shape_cast %28 : vector<2xf32> to vector<2x1xf32>
    %30 = tpu.reciprocal %29 {approx = true} : vector<2x1xf32> -> vector<2x1xf32>
    %31 = vector.broadcast %30 : vector<2x1xf32> to vector<2x8xf32>
    %32 = arith.mulf %27, %31 : vector<2x8xf32>
    %33 = vector.extract_strided_slice %32 {offsets = [0, 0], sizes = [1, 8], strides = [1, 1]} : vector<2x8xf32> to vector<1x8xf32>
    %34 = vector.extract_strided_slice %0 {offsets = [0, 0, 0], sizes = [1, 8, 256], strides = [1, 1, 1]} : vector<2x8x256xf32> to vector<1x8x256xf32>
    %35 = vector.shape_cast %34 : vector<1x8x256xf32> to vector<8x256xf32>
    %cst_10 = arith.constant dense<0.000000e+00> : vector<1x256xf32>
    %36 = tpu.matmul %33, %35, %cst_10 {dimension_numbers = #tpu.dot_dimension_numbers<[1], [0], [0], [1], [0, 0, 1, 1], [], []>} : vector<1x8xf32>, vector<8x256xf32>, vector<1x256xf32> -> vector<1x256xf32>
    %37 = vector.extract_strided_slice %32 {offsets = [1, 0], sizes = [1, 8], strides = [1, 1]} : vector<2x8xf32> to vector<1x8xf32>
    %38 = vector.extract_strided_slice %0 {offsets = [1, 0, 0], sizes = [1, 8, 256], strides = [1, 1, 1]} : vector<2x8x256xf32> to vector<1x8x256xf32>
    %39 = vector.shape_cast %38 : vector<1x8x256xf32> to vector<8x256xf32>
    %cst_11 = arith.constant dense<0.000000e+00> : vector<1x256xf32>
    %40 = tpu.matmul %37, %39, %cst_11 {dimension_numbers = #tpu.dot_dimension_numbers<[1], [0], [0], [1], [0, 0, 1, 1], [], []>} : vector<1x8xf32>, vector<8x256xf32>, vector<1x256xf32> -> vector<1x256xf32>
    %41 = tpu.concatenate %36, %40 in 0 : vector<1x256xf32>, vector<1x256xf32> -> vector<2x256xf32>
    %c0_12 = arith.constant 0 : index
    %c256 = arith.constant 256 : index
    %42 = vector.load %arg2[%c0_12, %c256] : memref<256x768xf32, #tpu.memory_space<vmem>>, vector<256x256xf32>
    %cst_13 = arith.constant dense<0.000000e+00> : vector<2x256xf32>
    %43 = tpu.matmul %41, %42, %cst_13 {dimension_numbers = #tpu.dot_dimension_numbers<[1], [0], [0], [1], [0, 0, 1, 1], [], []>} : vector<2x256xf32>, vector<256x256xf32>, vector<2x256xf32> -> vector<2x256xf32>
    %44 = vector.broadcast %4 : vector<1x256xf32> to vector<2x256xf32>
    %45 = arith.addf %43, %44 : vector<2x256xf32>
    %cst_14 = arith.constant dense<0.000000e+00> : vector<2xf32>
    %46 = vector.multi_reduction <add>, %45, %cst_14 [1] : vector<2x256xf32> to vector<2xf32>
    %47 = vector.shape_cast %46 : vector<2xf32> to vector<2x1xf32>
    %cst_15 = arith.constant 2.560000e+02 : f32
    %48 = vector.broadcast %cst_15 : f32 to vector<2x1xf32>
    %49 = arith.divf %47, %48 : vector<2x1xf32>
    %50 = vector.broadcast %49 : vector<2x1xf32> to vector<2x256xf32>
    %51 = arith.subf %45, %50 : vector<2x256xf32>
    %52 = arith.mulf %51, %51 : vector<2x256xf32>
    %cst_16 = arith.constant dense<0.000000e+00> : vector<2xf32>
    %53 = vector.multi_reduction <add>, %52, %cst_16 [1] : vector<2x256xf32> to vector<2xf32>
    %54 = vector.shape_cast %53 : vector<2xf32> to vector<2x1xf32>
    %cst_17 = arith.constant 2.560000e+02 : f32
    %55 = vector.broadcast %cst_17 : f32 to vector<2x1xf32>
    %56 = arith.divf %54, %55 : vector<2x1xf32>
    %57 = vector.broadcast %49 : vector<2x1xf32> to vector<2x256xf32>
    %58 = arith.subf %45, %57 : vector<2x256xf32>
    %cst_18 = arith.constant 9.99999974E-6 : f32
    %59 = vector.broadcast %cst_18 : f32 to vector<2x1xf32>
    %60 = arith.addf %56, %59 : vector<2x1xf32>
    %61 = math.rsqrt %60 : vector<2x1xf32>
    %62 = vector.broadcast %61 : vector<2x1xf32> to vector<2x256xf32>
    %63 = arith.mulf %58, %62 : vector<2x256xf32>
    %64 = vector.broadcast %5 : vector<1x256xf32> to vector<2x256xf32>
    %65 = arith.mulf %63, %64 : vector<2x256xf32>
    %66 = vector.broadcast %6 : vector<1x256xf32> to vector<2x256xf32>
    %67 = arith.addf %65, %66 : vector<2x256xf32>
    %cst_19 = arith.constant 0.000000e+00 : f32
    %68 = vector.broadcast %cst_19 : f32 to vector<2x256xf32>
    %69 = arith.cmpf ogt, %67, %68 : vector<2x256xf32>
    %70 = vector.broadcast %9 : f32 to vector<2x256xf32>
    %71 = arith.mulf %70, %67 : vector<2x256xf32>
    %72 = arith.select %69, %67, %71 : vector<2x256xi1>, vector<2x256xf32>
    %c0_20 = arith.constant 0 : index
    %c512 = arith.constant 512 : index
    %73 = vector.load %arg2[%c0_20, %c512] : memref<256x768xf32, #tpu.memory_space<vmem>>, vector<256x256xf32>
    %cst_21 = arith.constant dense<0.000000e+00> : vector<2x256xf32>
    %74 = tpu.matmul %72, %73, %cst_21 {dimension_numbers = #tpu.dot_dimension_numbers<[1], [0], [0], [1], [0, 0, 1, 1], [], []>} : vector<2x256xf32>, vector<256x256xf32>, vector<2x256xf32> -> vector<2x256xf32>
    %75 = vector.broadcast %7 : vector<1x256xf32> to vector<2x256xf32>
    %76 = arith.addf %74, %75 : vector<2x256xf32>
    %77 = arith.mulf %76, %76 : vector<2x256xf32>
    %cst_22 = arith.constant dense<0.000000e+00> : vector<2xf32>
    %78 = vector.multi_reduction <add>, %77, %cst_22 [1] : vector<2x256xf32> to vector<2xf32>
    %79 = vector.shape_cast %78 : vector<2xf32> to vector<2x1xf32>
    %80 = math.rsqrt %79 : vector<2x1xf32>
    %cst_23 = arith.constant 9.99999995E+11 : f32
    %81 = vector.broadcast %cst_23 : f32 to vector<2x1xf32>
    %82 = arith.minimumf %80, %81 : vector<2x1xf32>
    %83 = vector.broadcast %82 : vector<2x1xf32> to vector<2x256xf32>
    %84 = arith.mulf %76, %83 : vector<2x256xf32>
    %c0_24 = arith.constant 0 : index
    %c0_25 = arith.constant 0 : index
    %85 = vector.load %arg5[%c0_24, %c0_25] : memref<2x256xf32, #tpu.memory_space<vmem>>, vector<2x256xf32>
    %86 = arith.mulf %85, %85 : vector<2x256xf32>
    %cst_26 = arith.constant dense<0.000000e+00> : vector<2xf32>
    %87 = vector.multi_reduction <add>, %86, %cst_26 [1] : vector<2x256xf32> to vector<2xf32>
    %88 = vector.shape_cast %87 : vector<2xf32> to vector<2x1xf32>
    %89 = math.rsqrt %88 : vector<2x1xf32>
    %cst_27 = arith.constant 1.000000e+08 : f32
    %90 = vector.broadcast %cst_27 : f32 to vector<2x1xf32>
    %91 = arith.minimumf %89, %90 : vector<2x1xf32>
    %92 = vector.broadcast %91 : vector<2x1xf32> to vector<2x256xf32>
    %93 = arith.mulf %85, %92 : vector<2x256xf32>
    %cst_28 = arith.constant dense<0.000000e+00> : vector<2x2xf32>
    %94 = tpu.matmul %84, %93, %cst_28 {dimension_numbers = #tpu.dot_dimension_numbers<[1], [1], [0], [0], [0, 0, 1, 0], [], []>} : vector<2x256xf32>, vector<2x256xf32>, vector<2x2xf32> -> vector<2x2xf32>
    %cst_29 = arith.constant dense<0xFF800000> : vector<2xf32>
    %95 = vector.multi_reduction <maximumf>, %94, %cst_29 [1] : vector<2x2xf32> to vector<2xf32>
    %96 = vector.shape_cast %95 : vector<2xf32> to vector<2x1xf32>
    %97 = tpu.iota {dimensions = array<i32: 1>} : vector<2x2xi32>
    %98 = vector.broadcast %96 : vector<2x1xf32> to vector<2x2xf32>
    %99 = arith.cmpf oge, %94, %98 : vector<2x2xf32>
    %c2_i32 = arith.constant 2 : i32
    %100 = vector.broadcast %c2_i32 : i32 to vector<2x2xi32>
    %101 = arith.select %99, %97, %100 : vector<2x2xi1>, vector<2x2xi32>
    %cst_30 = arith.constant dense<2147483647> : vector<2xi32>
    %102 = vector.multi_reduction <minsi>, %101, %cst_30 [1] : vector<2x2xi32> to vector<2xi32>
    %103 = vector.shape_cast %102 : vector<2xi32> to vector<2x1xi32>
    %cst_31 = arith.constant 0.000000e+00 : f32
    %104 = vector.broadcast %cst_31 : f32 to vector<6x1xf32>
    %105 = tpu.concatenate %96, %104 in 0 : vector<2x1xf32>, vector<6x1xf32> -> vector<8x1xf32>
    %106 = arith.sitofp %103 : vector<2x1xi32> to vector<2x1xf32>
    %107 = tpu.concatenate %106, %104 in 0 : vector<2x1xf32>, vector<6x1xf32> -> vector<8x1xf32>
    %108 = tpu.iota {dimensions = array<i32: 1>} : vector<8x128xi32>
    %c0_i32 = arith.constant 0 : i32
    %109 = vector.broadcast %c0_i32 : i32 to vector<8x128xi32>
    %110 = arith.cmpi eq, %108, %109 : vector<8x128xi32>
    %c1_i32 = arith.constant 1 : i32
    %111 = vector.broadcast %c1_i32 : i32 to vector<8x128xi32>
    %112 = arith.cmpi eq, %108, %111 : vector<8x128xi32>
    %cst_32 = arith.constant 0.000000e+00 : f32
    %113 = vector.shape_cast %107 : vector<8x1xf32> to vector<8x1xf32>
    %114 = vector.broadcast %113 : vector<8x1xf32> to vector<8x128xf32>
    %115 = vector.broadcast %cst_32 : f32 to vector<8x128xf32>
    %116 = arith.select %112, %114, %115 : vector<8x128xi1>, vector<8x128xf32>
    %117 = vector.shape_cast %105 : vector<8x1xf32> to vector<8x1xf32>
    %118 = vector.broadcast %117 : vector<8x1xf32> to vector<8x128xf32>
    %119 = arith.select %110, %118, %116 : vector<8x128xi1>, vector<8x128xf32>
    %c0_33 = arith.constant 0 : index
    %c0_34 = arith.constant 0 : index
    %120 = vector.load %arg6[%c0_33, %c0_34] : memref<8x128xf32, #tpu.memory_space<vmem>>, vector<8x128xf32>
    tpu.vector_store %arg6[%c0_33, %c0_34], %119 {strides = array<i32>} : memref<8x128xf32, #tpu.memory_space<vmem>>, vector<8x128xf32>,
    return
  }
  func.func @transform_0(%arg0: i32) -> (i32, i32, i32) {
    %c0_i32 = arith.constant 0 : i32
    %c0_i32_0 = arith.constant 0 : i32
    %c0_i32_1 = arith.constant 0 : i32
    %c0_i32_2 = arith.constant 0 : i32
    return %c0_i32, %c0_i32_0, %c0_i32_1 : i32, i32, i32
  }
  func.func @transform_1(%arg0: i32) -> (i32, i32) {
    %c0_i32 = arith.constant 0 : i32
    %c0_i32_0 = arith.constant 0 : i32
    %c0_i32_1 = arith.constant 0 : i32
    return %c0_i32, %c0_i32_0 : i32, i32
  }
  func.func @transform_2(%arg0: i32) -> (i32, i32) {
    %c0_i32 = arith.constant 0 : i32
    %c0_i32_0 = arith.constant 0 : i32
    %c0_i32_1 = arith.constant 0 : i32
    return %c0_i32, %c0_i32_0 : i32, i32
  }
  func.func @transform_3(%arg0: i32) -> i32 {
    %c0_i32 = arith.constant 0 : i32
    %c0_i32_0 = arith.constant 0 : i32
    return %c0_i32 : i32
  }
  func.func @transform_4(%arg0: i32) -> (i32, i32) {
    %c0_i32 = arith.constant 0 : i32
    %c0_i32_0 = arith.constant 0 : i32
    %c0_i32_1 = arith.constant 0 : i32
    return %c0_i32, %c0_i32_0 : i32, i32
  }
  func.func @transform_5(%arg0: i32) -> (i32, i32) {
    %c0_i32 = arith.constant 0 : i32
    %c0_i32_0 = arith.constant 0 : i32
    %c0_i32_1 = arith.constant 0 : i32
    return %c0_i32, %c0_i32_0 : i32, i32
  }
}

</mosaic_0001>

<llo_original>
// kernel: tpu_custom_call.1
$region0: #{tpu_custom_call.1}
  #allocation0 [shape = 'u32[]', space=smem, size = 0x4, offset = 0x4, fixed_abs, tag = 'smem constant byte address 0x4 - core index']
  #allocation1 [shape = 'u32[144,128]{1,0:T(1,128)}', space=vmem, size = 0x12000, scoped, tag = 'internal scratch']
  %s0 = inlined_call_operand.hbm [shape: f32[2,8,256], index: 0, kind: input, shape index: {}]
  %s1 = inlined_call_operand.hbm [shape: f32[256,768], index: 1, kind: input, shape index: {}]
  %s2 = inlined_call_operand.hbm [shape: f32[8,256], index: 2, kind: input, shape index: {}]
  %s3 = inlined_call_operand.vmem [shape: f32[2], index: 3, kind: input, shape index: {}]
  %s4 = inlined_call_operand.vmem [shape: f32[2,256], index: 4, kind: input, shape index: {}]
  %s5 = inlined_call_operand.hbm [shape: f32[8,128], index: 5, kind: output, shape index: {}]
  %s6 = sld [smem:[#allocation0]]
  $region46: #{tpu_custom_call.1} parent=0
    _
  %s8 = ssub.s32 1, %s6
  %s9 = scalar_select 0, %s8, %s6
  $region1: #{tpu_custom_call.1} parent=0
    #allocation2 [shape = 'u8[16384]{0}', space=vmem, size = 0x4000, scoped, tag = 'input window, operand 0, single buffered']
    #allocation3 [shape = 's32[1]{0}', space=sflag, size = 0x4, scoped, tag = 'scoped memory for tpu_custom_call.1']
    #allocation4 [shape = 's32[1]{0}', space=sflag, size = 0x4, scoped, tag = 'scoped memory for tpu_custom_call.1']
    #allocation5 [shape = 's32[1]{0}', space=sflag, size = 0x4, scoped, tag = 'scoped memory for tpu_custom_call.1']
    #allocation6 [shape = 'u8[786432]{0}', space=vmem, size = 0xc0000, scoped, tag = 'input window, operand 1, single buffered']
    #allocation7 [shape = 's32[1]{0}', space=sflag, size = 0x4, scoped, tag = 'scoped memory for tpu_custom_call.1']
    #allocation8 [shape = 'u8[8192]{0}', space=vmem, size = 0x2000, scoped, tag = 'input window, operand 2, single buffered']
    #allocation9 [shape = 'u8[512]{0}', space=smem, size = 0x200, scoped, tag = 'input window, operand 3, single buffered']
    #allocation10 [shape = 'u8[4096]{0}', space=vmem, size = 0x1000, scoped, tag = 'output window, operand 0, single buffered']
    %10 = vsyncpa [#allocation3], 0
    %11 = vsyncpa [#allocation7], 0
    %12 = vsyncpa [#allocation5], 0
    %13 = vsyncpa [#allocation4], 0
    // Predicated region
    $region2: #{tpu_custom_call.1} parent=1 // pred_check
      _
    $region3: #{tpu_custom_call.1} parent=1 // pred_check_branch
      %15 = sbr.rel (0) target = $region5
    $region4: #{tpu_custom_call.1} parent=1 // pred_region
      %s17 = ssub.s32 512, 512
      %18 = vsyncadd [#allocation3], %s17
      %s19 = sshll.u32 [#allocation2], 4
      %s20 = int_to_ptr.vmem [resolvable:$true] %s19
      %25 = dma.hbm_to_vmem [thread:$0]  %s0, 512, %s20, [#allocation3], 256, 256, 16
    $region5: #{tpu_custom_call.1} parent=1 // pred_fallthru
      _
    // Predicated region
    $region6: #{tpu_custom_call.1} parent=1 // pred_check
      _
    $region7: #{tpu_custom_call.1} parent=1 // pred_check_branch
      %27 = sbr.rel (0) target = $region9
    $region8: #{tpu_custom_call.1} parent=1 // pred_region
      %s29 = ssub.s32 24576, 24576
      %30 = vsyncadd [#allocation7], %s29
      %s31 = sshll.u32 [#allocation6], 4
      %s32 = int_to_ptr.vmem [resolvable:$true] %s31
      %37 = dma.hbm_to_vmem [thread:$0]  %s1, 24576, %s32, [#allocation7], 768, 768, 48
    $region9: #{tpu_custom_call.1} parent=1 // pred_fallthru
      _
    // Predicated region
    $region10: #{tpu_custom_call.1} parent=1 // pred_check
      _
    $region11: #{tpu_custom_call.1} parent=1 // pred_check_branch
      %39 = sbr.rel (0) target = $region13
    $region12: #{tpu_custom_call.1} parent=1 // pred_region
      %s41 = ssub.s32 256, 256
      %42 = vsyncadd [#allocation7], %s41
      %s44 = sshll.u32 [#allocation8], 4
      %s45 = int_to_ptr.vmem [resolvable:$true] %s44
      %47 = dma.hbm_to_vmem [thread:$0]  %s2, 256, %s45, [#allocation7]
    $region13: #{tpu_custom_call.1} parent=1 // pred_fallthru
      _
    // Predicated region
    $region14: #{tpu_custom_call.1} parent=1 // pred_check
      _
    $region15: #{tpu_custom_call.1} parent=1 // pred_check_branch
      %49 = sbr.rel (0) target = $region17
    $region16: #{tpu_custom_call.1} parent=1 // pred_region
      %s51 = ssub.s32 16, 16
      %52 = vsyncadd [#allocation5], %s51
      %s54 = sshll.u32 %s3, 4
      %s55 = int_to_ptr.vmem [resolvable:$true] %s54
      %57 = dma.vmem_to_smem %s55, 16, [#allocation9], [#allocation5]
    $region17: #{tpu_custom_call.1} parent=1 // pred_fallthru
      _
    // Predicated region
    $region18: #{tpu_custom_call.1} parent=1 // pred_check
      _
    $region19: #{tpu_custom_call.1} parent=1 // pred_check_branch
      %59 = sbr.rel (0) target = $region21
    $region20: #{tpu_custom_call.1} parent=1 // pred_region
      _
    $region21: #{tpu_custom_call.1} parent=1 // pred_fallthru
      _
    // Predicated region
    $region22: #{tpu_custom_call.1} parent=1 // pred_check
      _
    $region23: #{tpu_custom_call.1} parent=1 // pred_check_branch
      %61 = sbr.rel (0) target = $region25
    $region24: #{tpu_custom_call.1} parent=1 // pred_region
      %62 = dma.done [#allocation3], 512
    $region25: #{tpu_custom_call.1} parent=1 // pred_fallthru
      _
    // Predicated region
    $region26: #{tpu_custom_call.1} parent=1 // pred_check
      _
    $region27: #{tpu_custom_call.1} parent=1 // pred_check_branch
      %64 = sbr.rel (0) target = $region29
    $region28: #{tpu_custom_call.1} parent=1 // pred_region
      %65 = dma.done [#allocation7], 24576
    $region29: #{tpu_custom_call.1} parent=1 // pred_fallthru
      _
    // Predicated region
    $region30: #{tpu_custom_call.1} parent=1 // pred_check
      _
    $region31: #{tpu_custom_call.1} parent=1 // pred_check_branch
      %67 = sbr.rel (0) target = $region33
    $region32: #{tpu_custom_call.1} parent=1 // pred_region
      %68 = dma.done [#allocation7], 256
    $region33: #{tpu_custom_call.1} parent=1 // pred_fallthru
      _
    // Predicated region
    $region34: #{tpu_custom_call.1} parent=1 // pred_check
      _
    $region35: #{tpu_custom_call.1} parent=1 // pred_check_branch
      %70 = sbr.rel (0) target = $region37
    $region36: #{tpu_custom_call.1} parent=1 // pred_region
      %71 = dma.done [#allocation5], 16
    $region37: #{tpu_custom_call.1} parent=1 // pred_fallthru
      _
    %72 = sfence
    %v73 = vld [vmem:[#allocation2] sm:$0xff]
    %v74 = vld [vmem:[#allocation2 + $0x8] sm:$0xff]
    %v75 = vld [vmem:[#allocation2 + $0x10] sm:$0xff]
    %v76 = vld [vmem:[#allocation2 + $0x18] sm:$0xff]
    %v77 = vld [vmem:[#allocation8] sm:$0xff]
    %v78 = vld [vmem:[#allocation8 + $0x8] sm:$0xff]
    %s79 = sld [smem:[#allocation9]]
    %s80 = sld [smem:[#allocation9 + $0x1]]
    %v81 = vld [vmem:[#allocation6] sm:$0xff]
    %v82 = vld [vmem:[#allocation6 + $0x8] sm:$0xff]
    %v83 = vld [vmem:[#allocation6 + $0x30] sm:$0xff]
    %v84 = vld [vmem:[#allocation6 + $0x38] sm:$0xff]
    %v85 = vld [vmem:[#allocation6 + $0x60] sm:$0xff]
    %v86 = vld [vmem:[#allocation6 + $0x68] sm:$0xff]
    %v87 = vld [vmem:[#allocation6 + $0x90] sm:$0xff]
    %v88 = vld [vmem:[#allocation6 + $0x98] sm:$0xff]
    %v89 = vld [vmem:[#allocation6 + $0xc0] sm:$0xff]
    %v90 = vld [vmem:[#allocation6 + $0xc8] sm:$0xff]
    %v91 = vld [vmem:[#allocation6 + $0xf0] sm:$0xff]
    %v92 = vld [vmem:[#allocation6 + $0xf8] sm:$0xff]
    %v93 = vld [vmem:[#allocation6 + $0x120] sm:$0xff]
    %v94 = vld [vmem:[#allocation6 + $0x128] sm:$0xff]
    %v95 = vld [vmem:[#allocation6 + $0x150] sm:$0xff]
    %v96 = vld [vmem:[#allocation6 + $0x158] sm:$0xff]
    %v97 = vld [vmem:[#allocation6 + $0x180] sm:$0xff]
    %v98 = vld [vmem:[#allocation6 + $0x188] sm:$0xff]
    %v99 = vld [vmem:[#allocation6 + $0x1b0] sm:$0xff]
    %v100 = vld [vmem:[#allocation6 + $0x1b8] sm:$0xff]
    %v101 = vld [vmem:[#allocation6 + $0x1e0] sm:$0xff]
    %v102 = vld [vmem:[#allocation6 + $0x1e8] sm:$0xff]
    %v103 = vld [vmem:[#allocation6 + $0x210] sm:$0xff]
    %v104 = vld [vmem:[#allocation6 + $0x218] sm:$0xff]
    %v105 = vld [vmem:[#allocation6 + $0x240] sm:$0xff]
    %v106 = vld [vmem:[#allocation6 + $0x248] sm:$0xff]
    %v107 = vld [vmem:[#allocation6 + $0x270] sm:$0xff]
    %v108 = vld [vmem:[#allocation6 + $0x278] sm:$0xff]
    %v109 = vld [vmem:[#allocation6 + $0x2a0] sm:$0xff]
    %v110 = vld [vmem:[#allocation6 + $0x2a8] sm:$0xff]
    %v111 = vld [vmem:[#allocation6 + $0x2d0] sm:$0xff]
    %v112 = vld [vmem:[#allocation6 + $0x2d8] sm:$0xff]
    %v113 = vld [vmem:[#allocation6 + $0x300] sm:$0xff]
    %v114 = vld [vmem:[#allocation6 + $0x308] sm:$0xff]
    %v115 = vld [vmem:[#allocation6 + $0x330] sm:$0xff]
    %v116 = vld [vmem:[#allocation6 + $0x338] sm:$0xff]
    %v117 = vld [vmem:[#allocation6 + $0x360] sm:$0xff]
    %v118 = vld [vmem:[#allocation6 + $0x368] sm:$0xff]
    %v119 = vld [vmem:[#allocation6 + $0x390] sm:$0xff]
    %v120 = vld [vmem:[#allocation6 + $0x398] sm:$0xff]
    %v121 = vld [vmem:[#allocation6 + $0x3c0] sm:$0xff]
    %v122 = vld [vmem:[#allocation6 + $0x3c8] sm:$0xff]
    %v123 = vld [vmem:[#allocation6 + $0x3f0] sm:$0xff]
    %v124 = vld [vmem:[#allocation6 + $0x3f8] sm:$0xff]
    %v125 = vld [vmem:[#allocation6 + $0x420] sm:$0xff]
    %v126 = vld [vmem:[#allocation6 + $0x428] sm:$0xff]
    %v127 = vld [vmem:[#allocation6 + $0x450] sm:$0xff]
    %v128 = vld [vmem:[#allocation6 + $0x458] sm:$0xff]
    %v129 = vld [vmem:[#allocation6 + $0x480] sm:$0xff]
    %v130 = vld [vmem:[#allocation6 + $0x488] sm:$0xff]
    %v131 = vld [vmem:[#allocation6 + $0x4b0] sm:$0xff]
    %v132 = vld [vmem:[#allocation6 + $0x4b8] sm:$0xff]
    %v133 = vld [vmem:[#allocation6 + $0x4e0] sm:$0xff]
    %v134 = vld [vmem:[#allocation6 + $0x4e8] sm:$0xff]
    %v135 = vld [vmem:[#allocation6 + $0x510] sm:$0xff]
    %v136 = vld [vmem:[#allocation6 + $0x518] sm:$0xff]
    %v137 = vld [vmem:[#allocation6 + $0x540] sm:$0xff]
    %v138 = vld [vmem:[#allocation6 + $0x548] sm:$0xff]
    %v139 = vld [vmem:[#allocation6 + $0x570] sm:$0xff]
    %v140 = vld [vmem:[#allocation6 + $0x578] sm:$0xff]
    %v141 = vld [vmem:[#allocation6 + $0x5a0] sm:$0xff]
    %v142 = vld [vmem:[#allocation6 + $0x5a8] sm:$0xff]
    %v143 = vld [vmem:[#allocation6 + $0x5d0] sm:$0xff]
    %v144 = vld [vmem:[#allocation6 + $0x5d8] sm:$0xff]
    %v145 = vlaneseq
    %v146 = vshrl.u32 %v145, 7
    %v147 = vsub.s32 0, %v146
    %v148 = vrot.slane %v77, %v147
    %v149 = vlaneseq
    %v150 = vshrl.u32 %v149, 7
    %v151 = vsub.s32 0, %v150
    %v152 = vrot.slane %v78, %v151
    %153 = vmatprep.subr.mxu0 %v82
    %154 = vmatpush1.msra.mxu0 %v81
    %155 = vmatprep.subr.mxu0 %v84
    %156 = vmatpush1.msra.mxu0 %v83
    %157 = vmatprep.subr.mxu0 %v86
    %158 = vmatpush1.msra.mxu0 %v85
    %159 = vmatprep.subr.mxu0 %v88
    %160 = vmatpush1.msra.mxu0 %v87
    %161 = vmatprep.subr.mxu0 %v90
    %162 = vmatpush1.msra.mxu0 %v89
    %163 = vmatprep.subr.mxu0 %v92
    %164 = vmatpush1.msra.mxu0 %v91
    %165 = vmatprep.subr.mxu0 %v94
    %166 = vmatpush1.msra.mxu0 %v93
    %167 = vmatprep.subr.mxu0 %v96
    %168 = vmatpush1.msra.mxu0 %v95
    %169 = vmatprep.subr.mxu0 %v98
    %170 = vmatpush1.msra.mxu0 %v97
    %171 = vmatprep.subr.mxu0 %v100
    %172 = vmatpush1.msra.mxu0 %v99
    %173 = vmatprep.subr.mxu0 %v102
    %174 = vmatpush1.msra.mxu0 %v101
    %175 = vmatprep.subr.mxu0 %v104
    %176 = vmatpush1.msra.mxu0 %v103
    %177 = vmatprep.subr.mxu0 %v106
    %178 = vmatpush1.msra.mxu0 %v105
    %179 = vmatprep.subr.mxu0 %v108
    %180 = vmatpush1.msra.mxu0 %v107
    %181 = vmatprep.subr.mxu0 %v110
    %182 = vmatpush1.msra.mxu0 %v109
    %183 = vmatprep.subr.mxu0 %v112
    %184 = vmatpush1.msra.mxu0 %v111
    %185 = vmatprep.subr.mxu0 %v114
    %186 = vmatpush1.msra.mxu0 %v113
    %187 = vmatprep.subr.mxu0 %v116
    %188 = vmatpush1.msra.mxu0 %v115
    %189 = vmatprep.subr.mxu0 %v118
    %190 = vmatpush1.msra.mxu0 %v117
    %191 = vmatprep.subr.mxu0 %v120
    %192 = vmatpush1.msra.mxu0 %v119
    %193 = vmatprep.subr.mxu0 %v122
    %194 = vmatpush1.msra.mxu0 %v121
    %195 = vmatprep.subr.mxu0 %v124
    %196 = vmatpush1.msra.mxu0 %v123
    %197 = vmatprep.subr.mxu0 %v126
    %198 = vmatpush1.msra.mxu0 %v125
    %199 = vmatprep.subr.mxu0 %v128
    %200 = vmatpush1.msra.mxu0 %v127
    %201 = vmatprep.subr.mxu0 %v130
    %202 = vmatpush1.msra.mxu0 %v129
    %203 = vmatprep.subr.mxu0 %v132
    %204 = vmatpush1.msra.mxu0 %v131
    %205 = vmatprep.subr.mxu0 %v134
    %206 = vmatpush1.msra.mxu0 %v133
    %207 = vmatprep.subr.mxu0 %v136
    %208 = vmatpush1.msra.mxu0 %v135
    %209 = vmatprep.subr.mxu0 %v138
    %210 = vmatpush1.msra.mxu0 %v137
    %211 = vmatprep.subr.mxu0 %v140
    %212 = vmatpush1.msra.mxu0 %v139
    %213 = vmatprep.subr.mxu0 %v142
    %214 = vmatpush1.msra.mxu0 %v141
    %215 = vmatprep.subr.mxu0 %v144
    %216 = vmatpush1.msra.mxu0 %v143
    %217 = vmatprep.mubr.f32.mxu0 %v74
    %218 = vmatmul.mubr.f32.gmra.mrb[0].mxu0 %v73
    %v219 = vpop.f32.mrb[0].mxu0
    %v220 = vadd.f32 %v148, %v219
    %v221 = vpop.f32.mrb[0].mxu0
    %v222 = vadd.f32 %v152, %v221
    %223 = vmatprep.mubr.f32.mxu0 %v76
    %224 = vmatmul.mubr.f32.gmra.mrb[0].mxu0 %v75
    %v225 = vpop.f32.mrb[0].mxu0
    %v226 = vadd.f32 %v148, %v225
    %v227 = vpop.f32.mrb[0].mxu0
    %v228 = vadd.f32 %v152, %v227
    %229 = vdwg.mxu0
    %v230 = vtanh.pop %v220
    %v231 = vtanh.pop %v222
    %v232 = vtanh.pop %v226
    %v233 = vtanh.pop %v228
    %v234 = vlaneseq
    %v235 = vshrl.u32 %v234, 7
    %v236 = vsub.s32 1, %v235
    %v237 = vrot.slane %v77, %v236
    %v238 = vlaneseq
    %v239 = vshrl.u32 %v238, 7
    %v240 = vsub.s32 1, %v239
    %v241 = vrot.slane %v78, %v240
    %v242 = vmul.f32 %v230, %v237
    %v243 = vmul.f32 %v231, %v241
    %v244 = vmul.f32 %v232, %v237
    %v245 = vmul.f32 %v233, %v241
    %v246 = vadd.f32 %v242, %v243
    %247 = vadd.xlane.f32.xlu0 %v246
    %v248 = vpop.xlane.xlu0 %247
    %v249 = vadd.f32 %v244, %v245
    %250 = vadd.xlane.f32.xlu0 %v249
    %v251 = vpop.xlane.xlu0 %250
    %v252 = vstv %s79
    %v253 = vadd.f32 %v248, %v252
    %v254 = vadd.f32 %v251, %v252
    %v257 = vlaneseq
    %v258 = vand.u32 %v257, 127
    %v259 = vlaneseq
    %v260 = vshrl.u32 %v259, 7
    %v261 = vsub.s32 %v258, %v260
    %v262 = vrot.slane %v253, %v261
    %v263 = vlaneseq
    %v264 = vshrl.u32 %v263, 7
    %v265 = vsub.s32 %v258, %v264
    %v266 = vrot.slane %v254, %v265
    %vm267 = vcmask 1041409
    %v268 = vsel %vm267, %v266, %v262
    %vm270 = vcmask 58368
    %v271 = vsel %vm270, %v268, -inf
    %272 = vmax.xlane.f32.xlu0 %v271
    %v273 = vpop.xlane.xlu0 %272
    %v275 = vlaneseq
    %v276 = vshrl.u32 %v275, 7
    %v277 = vsub.s32 0, %v276
    %v278 = vrot.slane %v273, %v277
    %v279 = vlaneseq
    %v280 = vshrl.u32 %v279, 7
    %v281 = vsub.s32 1, %v280
    %v282 = vrot.slane %v273, %v281
    %v285 = vsub.f32 %v253, %v278
    %v286 = vsub.f32 %v254, %v282
    %v287 = vmul.f32 %v285, 1.442695
    %v288 = vpow.pop %v287
    %v289 = vmul.f32 %v286, 1.442695
    %v290 = vpow.pop %v289
    %293 = vset.pattern.permute.xlu0 0
    %294 = vperm.xlu0 %293, %v288
    %v295 = vpop.permute.xlu0 %294
    %296 = vset.pattern.permute.xlu0 0
    %297 = vperm.xlu0 %296, %v290
    %v298 = vpop.permute.xlu0 %297
    %v299 = vlaneseq
    %v300 = vshrl.u32 %v299, 7
    %v301 = vsub.s32 %v258, %v300
    %v302 = vrot.slane %v295, %v301
    %v303 = vlaneseq
    %v304 = vshrl.u32 %v303, 7
    %v305 = vsub.s32 %v258, %v304
    %v306 = vrot.slane %v298, %v305
    %v307 = vsel %vm267, %v306, %v302
    %v309 = vsel %vm270, %v307, 0.0
    %310 = vadd.xlane.f32.xlu0 %v309
    %v311 = vpop.xlane.xlu0 %310
    %v312 = vrcp.pop %v311
    %v314 = vlaneseq
    %v315 = vshrl.u32 %v314, 7
    %v316 = vsub.s32 0, %v315
    %v317 = vrot.slane %v312, %v316
    %v318 = vlaneseq
    %v319 = vshrl.u32 %v318, 7
    %v320 = vsub.s32 1, %v319
    %v321 = vrot.slane %v312, %v320
    %v324 = vmul.f32 %v288, %v317
    %v325 = vmul.f32 %v290, %v321
    %327 = vset.pattern.permute.xlu0 0
    %328 = vperm.xlu0 %327, %v324
    %v329 = vpop.permute.xlu0 %328
    %v330 = vlaneseq
    %v331 = vshrl.u32 %v330, 7
    %v332 = vsub.s32 %v258, %v331
    %v333 = vrot.slane %v329, %v332
    %vm334 = vcmask 64512
    %v335 = vsel %vm334, %v333, 0
    %337 = vmatprep.subr.mxu0 %v74
    %338 = vmatpush1.msra.mxu0 %v73
    %339 = vmatprep.subr.mxu0 0.0
    %340 = vmatpush1.msra.mxu0 0.0
    %341 = vmatprep.subr.mxu0 0.0
    %342 = vmatpush1.msra.mxu0 0.0
    %343 = vmatprep.subr.mxu0 0.0
    %344 = vmatpush1.msra.mxu0 0.0
    %345 = vmatprep.subr.mxu0 0.0
    %346 = vmatpush1.msra.mxu0 0.0
    %347 = vmatprep.subr.mxu0 0.0
    %348 = vmatpush1.msra.mxu0 0.0
    %349 = vmatprep.subr.mxu0 0.0
    %350 = vmatpush1.msra.mxu0 0.0
    %351 = vmatprep.subr.mxu0 0.0
    %352 = vmatpush1.msra.mxu0 0.0
    %353 = vmatprep.subr.mxu0 0.0
    %354 = vmatpush1.msra.mxu0 0.0
    %355 = vmatprep.subr.mxu0 0.0
    %356 = vmatpush1.msra.mxu0 0.0
    %357 = vmatprep.subr.mxu0 0.0
    %358 = vmatpush1.msra.mxu0 0.0
    %359 = vmatprep.subr.mxu0 0.0
    %360 = vmatpush1.msra.mxu0 0.0
    %361 = vmatprep.subr.mxu0 0.0
    %362 = vmatpush1.msra.mxu0 0.0
    %363 = vmatprep.subr.mxu0 0.0
    %364 = vmatpush1.msra.mxu0 0.0
    %365 = vmatprep.subr.mxu0 0.0
    %366 = vmatpush1.msra.mxu0 0.0
    %367 = vmatprep.subr.mxu0 0.0
    %368 = vmatpush1.msra.mxu0 0.0
    %369 = vmatprep.subr.mxu0 0.0
    %370 = vmatpush1.msra.mxu0 0.0
    %371 = vmatprep.subr.mxu0 0.0
    %372 = vmatpush1.msra.mxu0 0.0
    %373 = vmatprep.subr.mxu0 0.0
    %374 = vmatpush1.msra.mxu0 0.0
    %375 = vmatprep.subr.mxu0 0.0
    %376 = vmatpush1.msra.mxu0 0.0
    %377 = vmatprep.subr.mxu0 0.0
    %378 = vmatpush1.msra.mxu0 0.0
    %379 = vmatprep.subr.mxu0 0.0
    %380 = vmatpush1.msra.mxu0 0.0
    %381 = vmatprep.subr.mxu0 0.0
    %382 = vmatpush1.msra.mxu0 0.0
    %383 = vmatprep.subr.mxu0 0.0
    %384 = vmatpush1.msra.mxu0 0.0
    %385 = vmatprep.subr.mxu0 0.0
    %386 = vmatpush1.msra.mxu0 0.0
    %387 = vmatprep.subr.mxu0 0.0
    %388 = vmatpush1.msra.mxu0 0.0
    %389 = vmatprep.subr.mxu0 0.0
    %390 = vmatpush1.msra.mxu0 0.0
    %391 = vmatprep.subr.mxu0 0.0
    %392 = vmatpush1.msra.mxu0 0.0
    %393 = vmatprep.subr.mxu0 0.0
    %394 = vmatpush1.msra.mxu0 0.0
    %395 = vmatprep.subr.mxu0 0.0
    %396 = vmatpush1.msra.mxu0 0.0
    %397 = vmatprep.subr.mxu0 0.0
    %398 = vmatpush1.msra.mxu0 0.0
    %399 = vmatprep.subr.mxu0 0.0
    %400 = vmatpush1.msra.mxu0 0.0
    %401 = vmatprep.mubr.f32.mxu0 0.0
    %402 = vmatmul.mubr.f32.gmra.mrb[0].mxu0 %v335
    %v403 = vpop.f32.mrb[0].mxu0
    %v404 = vadd.f32 0.0, %v403
    %v405 = vpop.f32.mrb[0].mxu0
    %v406 = vadd.f32 0.0, %v405
    %407 = vdwg.mxu0
    %409 = vset.pattern.permute.xlu0 0
    %410 = vperm.xlu0 %409, %v325
    %v411 = vpop.permute.xlu0 %410
    %v412 = vlaneseq
    %v413 = vshrl.u32 %v412, 7
    %v414 = vsub.s32 %v258, %v413
    %v415 = vrot.slane %v411, %v414
    %v416 = vsel %vm334, %v415, 0
    %418 = vmatprep.subr.mxu0 %v76
    %419 = vmatpush1.msra.mxu0 %v75
    %420 = vmatprep.subr.mxu0 0.0
    %421 = vmatpush1.msra.mxu0 0.0
    %422 = vmatprep.subr.mxu0 0.0
    %423 = vmatpush1.msra.mxu0 0.0
    %424 = vmatprep.subr.mxu0 0.0
    %425 = vmatpush1.msra.mxu0 0.0
    %426 = vmatprep.subr.mxu0 0.0
    %427 = vmatpush1.msra.mxu0 0.0
    %428 = vmatprep.subr.mxu0 0.0
    %429 = vmatpush1.msra.mxu0 0.0
    %430 = vmatprep.subr.mxu0 0.0
    %431 = vmatpush1.msra.mxu0 0.0
    %432 = vmatprep.subr.mxu0 0.0
    %433 = vmatpush1.msra.mxu0 0.0
    %434 = vmatprep.subr.mxu0 0.0
    %435 = vmatpush1.msra.mxu0 0.0
    %436 = vmatprep.subr.mxu0 0.0
    %437 = vmatpush1.msra.mxu0 0.0
    %438 = vmatprep.subr.mxu0 0.0
    %439 = vmatpush1.msra.mxu0 0.0
    %440 = vmatprep.subr.mxu0 0.0
    %441 = vmatpush1.msra.mxu0 0.0
    %442 = vmatprep.subr.mxu0 0.0
    %443 = vmatpush1.msra.mxu0 0.0
    %444 = vmatprep.subr.mxu0 0.0
    %445 = vmatpush1.msra.mxu0 0.0
    %446 = vmatprep.subr.mxu0 0.0
    %447 = vmatpush1.msra.mxu0 0.0
    %448 = vmatprep.subr.mxu0 0.0
    %449 = vmatpush1.msra.mxu0 0.0
    %450 = vmatprep.subr.mxu0 0.0
    %451 = vmatpush1.msra.mxu0 0.0
    %452 = vmatprep.subr.mxu0 0.0
    %453 = vmatpush1.msra.mxu0 0.0
    %454 = vmatprep.subr.mxu0 0.0
    %455 = vmatpush1.msra.mxu0 0.0
    %456 = vmatprep.subr.mxu0 0.0
    %457 = vmatpush1.msra.mxu0 0.0
    %458 = vmatprep.subr.mxu0 0.0
    %459 = vmatpush1.msra.mxu0 0.0
    %460 = vmatprep.subr.mxu0 0.0
    %461 = vmatpush1.msra.mxu0 0.0
    %462 = vmatprep.subr.mxu0 0.0
    %463 = vmatpush1.msra.mxu0 0.0
    %464 = vmatprep.subr.mxu0 0.0
    %465 = vmatpush1.msra.mxu0 0.0
    %466 = vmatprep.subr.mxu0 0.0
    %467 = vmatpush1.msra.mxu0 0.0
    %468 = vmatprep.subr.mxu0 0.0
    %469 = vmatpush1.msra.mxu0 0.0
    %470 = vmatprep.subr.mxu0 0.0
    %471 = vmatpush1.msra.mxu0 0.0
    %472 = vmatprep.subr.mxu0 0.0
    %473 = vmatpush1.msra.mxu0 0.0
    %474 = vmatprep.subr.mxu0 0.0
    %475 = vmatpush1.msra.mxu0 0.0
    %476 = vmatprep.subr.mxu0 0.0
    %477 = vmatpush1.msra.mxu0 0.0
    %478 = vmatprep.subr.mxu0 0.0
    %479 = vmatpush1.msra.mxu0 0.0
    %480 = vmatprep.subr.mxu0 0.0
    %481 = vmatpush1.msra.mxu0 0.0
    %482 = vmatprep.mubr.f32.mxu0 0.0
    %483 = vmatmul.mubr.f32.gmra.mrb[0].mxu0 %v416
    %v484 = vpop.f32.mrb[0].mxu0
    %v485 = vadd.f32 0.0, %v484
    %v486 = vpop.f32.mrb[0].mxu0
    %v487 = vadd.f32 0.0, %v486
    %488 = vdwg.mxu0
    %v491 = vrot.slane %v485, 7
    %v492 = vrot.slane %v487, 7
    %vm495 = vcmask 1040384
    %v496 = vsel %vm495, %v404, %v491
    %v497 = vsel %vm495, %v406, %v492
    %v498 = vld [vmem:[#allocation6 + $0x10] sm:$0xff]
    %v499 = vld [vmem:[#allocation6 + $0x18] sm:$0xff]
    %v500 = vld [vmem:[#allocation6 + $0x40] sm:$0xff]
    %v501 = vld [vmem:[#allocation6 + $0x48] sm:$0xff]
    %v502 = vld [vmem:[#allocation6 + $0x70] sm:$0xff]
    %v503 = vld [vmem:[#allocation6 + $0x78] sm:$0xff]
    %v504 = vld [vmem:[#allocation6 + $0xa0] sm:$0xff]
    %v505 = vld [vmem:[#allocation6 + $0xa8] sm:$0xff]
    %v506 = vld [vmem:[#allocation6 + $0xd0] sm:$0xff]
    %v507 = vld [vmem:[#allocation6 + $0xd8] sm:$0xff]
    %v508 = vld [vmem:[#allocation6 + $0x100] sm:$0xff]
    %v509 = vld [vmem:[#allocation6 + $0x108] sm:$0xff]
    %v510 = vld [vmem:[#allocation6 + $0x130] sm:$0xff]
    %v511 = vld [vmem:[#allocation6 + $0x138] sm:$0xff]
    %v512 = vld [vmem:[#allocation6 + $0x160] sm:$0xff]
    %v513 = vld [vmem:[#allocation6 + $0x168] sm:$0xff]
    %v514 = vld [vmem:[#allocation6 + $0x190] sm:$0xff]
    %v515 = vld [vmem:[#allocation6 + $0x198] sm:$0xff]
    %v516 = vld [vmem:[#allocation6 + $0x1c0] sm:$0xff]
    %v517 = vld [vmem:[#allocation6 + $0x1c8] sm:$0xff]
    %v518 = vld [vmem:[#allocation6 + $0x1f0] sm:$0xff]
    %v519 = vld [vmem:[#allocation6 + $0x1f8] sm:$0xff]
    %v520 = vld [vmem:[#allocation6 + $0x220] sm:$0xff]
    %v521 = vld [vmem:[#allocation6 + $0x228] sm:$0xff]
    %v522 = vld [vmem:[#allocation6 + $0x250] sm:$0xff]
    %v523 = vld [vmem:[#allocation6 + $0x258] sm:$0xff]
    %v524 = vld [vmem:[#allocation6 + $0x280] sm:$0xff]
    %v525 = vld [vmem:[#allocation6 + $0x288] sm:$0xff]
    %v526 = vld [vmem:[#allocation6 + $0x2b0] sm:$0xff]
    %v527 = vld [vmem:[#allocation6 + $0x2b8] sm:$0xff]
    %v528 = vld [vmem:[#allocation6 + $0x2e0] sm:$0xff]
    %v529 = vld [vmem:[#allocation6 + $0x2e8] sm:$0xff]
    %v530 = vld [vmem:[#allocation6 + $0x310] sm:$0xff]
    %v531 = vld [vmem:[#allocation6 + $0x318] sm:$0xff]
    %v532 = vld [vmem:[#allocation6 + $0x340] sm:$0xff]
    %v533 = vld [vmem:[#allocation6 + $0x348] sm:$0xff]
    %v534 = vld [vmem:[#allocation6 + $0x370] sm:$0xff]
    %v535 = vld [vmem:[#allocation6 + $0x378] sm:$0xff]
    %v536 = vld [vmem:[#allocation6 + $0x3a0] sm:$0xff]
    %v537 = vld [vmem:[#allocation6 + $0x3a8] sm:$0xff]
    %v538 = vld [vmem:[#allocation6 + $0x3d0] sm:$0xff]
    %v539 = vld [vmem:[#allocation6 + $0x3d8] sm:$0xff]
    %v540 = vld [vmem:[#allocation6 + $0x400] sm:$0xff]
    %v541 = vld [vmem:[#allocation6 + $0x408] sm:$0xff]
    %v542 = vld [vmem:[#allocation6 + $0x430] sm:$0xff]
    %v543 = vld [vmem:[#allocation6 + $0x438] sm:$0xff]
    %v544 = vld [vmem:[#allocation6 + $0x460] sm:$0xff]
    %v545 = vld [vmem:[#allocation6 + $0x468] sm:$0xff]
    %v546 = vld [vmem:[#allocation6 + $0x490] sm:$0xff]
    %v547 = vld [vmem:[#allocation6 + $0x498] sm:$0xff]
    %v548 = vld [vmem:[#allocation6 + $0x4c0] sm:$0xff]
    %v549 = vld [vmem:[#allocation6 + $0x4c8] sm:$0xff]
    %v550 = vld [vmem:[#allocation6 + $0x4f0] sm:$0xff]
    %v551 = vld [vmem:[#allocation6 + $0x4f8] sm:$0xff]
    %v552 = vld [vmem:[#allocation6 + $0x520] sm:$0xff]
    %v553 = vld [vmem:[#allocation6 + $0x528] sm:$0xff]
    %v554 = vld [vmem:[#allocation6 + $0x550] sm:$0xff]
    %v555 = vld [vmem:[#allocation6 + $0x558] sm:$0xff]
    %v556 = vld [vmem:[#allocation6 + $0x580] sm:$0xff]
    %v557 = vld [vmem:[#allocation6 + $0x588] sm:$0xff]
    %v558 = vld [vmem:[#allocation6 + $0x5b0] sm:$0xff]
    %v559 = vld [vmem:[#allocation6 + $0x5b8] sm:$0xff]
    %v560 = vld [vmem:[#allocation6 + $0x5e0] sm:$0xff]
    %v561 = vld [vmem:[#allocation6 + $0x5e8] sm:$0xff]
    %v562 = vlaneseq
    %v563 = vshrl.u32 %v562, 7
    %v564 = vsub.s32 2, %v563
    %v565 = vrot.slane %v77, %v564
    %v566 = vlaneseq
    %v567 = vshrl.u32 %v566, 7
    %v568 = vsub.s32 2, %v567
    %v569 = vrot.slane %v78, %v568
    %570 = vmatprep.subr.mxu0 %v499
    %571 = vmatpush1.msra.mxu0 %v498
    %572 = vmatprep.subr.mxu0 %v501
    %573 = vmatpush1.msra.mxu0 %v500
    %574 = vmatprep.subr.mxu0 %v503
    %575 = vmatpush1.msra.mxu0 %v502
    %576 = vmatprep.subr.mxu0 %v505
    %577 = vmatpush1.msra.mxu0 %v504
    %578 = vmatprep.subr.mxu0 %v507
    %579 = vmatpush1.msra.mxu0 %v506
    %580 = vmatprep.subr.mxu0 %v509
    %581 = vmatpush1.msra.mxu0 %v508
    %582 = vmatprep.subr.mxu0 %v511
    %583 = vmatpush1.msra.mxu0 %v510
    %584 = vmatprep.subr.mxu0 %v513
    %585 = vmatpush1.msra.mxu0 %v512
    %586 = vmatprep.subr.mxu0 %v515
    %587 = vmatpush1.msra.mxu0 %v514
    %588 = vmatprep.subr.mxu0 %v517
    %589 = vmatpush1.msra.mxu0 %v516
    %590 = vmatprep.subr.mxu0 %v519
    %591 = vmatpush1.msra.mxu0 %v518
    %592 = vmatprep.subr.mxu0 %v521
    %593 = vmatpush1.msra.mxu0 %v520
    %594 = vmatprep.subr.mxu0 %v523
    %595 = vmatpush1.msra.mxu0 %v522
    %596 = vmatprep.subr.mxu0 %v525
    %597 = vmatpush1.msra.mxu0 %v524
    %598 = vmatprep.subr.mxu0 %v527
    %599 = vmatpush1.msra.mxu0 %v526
    %600 = vmatprep.subr.mxu0 %v529
    %601 = vmatpush1.msra.mxu0 %v528
    %602 = vmatprep.subr.mxu0 %v531
    %603 = vmatpush1.msra.mxu0 %v530
    %604 = vmatprep.subr.mxu0 %v533
    %605 = vmatpush1.msra.mxu0 %v532
    %606 = vmatprep.subr.mxu0 %v535
    %607 = vmatpush1.msra.mxu0 %v534
    %608 = vmatprep.subr.mxu0 %v537
    %609 = vmatpush1.msra.mxu0 %v536
    %610 = vmatprep.subr.mxu0 %v539
    %611 = vmatpush1.msra.mxu0 %v538
    %612 = vmatprep.subr.mxu0 %v541
    %613 = vmatpush1.msra.mxu0 %v540
    %614 = vmatprep.subr.mxu0 %v543
    %615 = vmatpush1.msra.mxu0 %v542
    %616 = vmatprep.subr.mxu0 %v545
    %617 = vmatpush1.msra.mxu0 %v544
    %618 = vmatprep.subr.mxu0 %v547
    %619 = vmatpush1.msra.mxu0 %v546
    %620 = vmatprep.subr.mxu0 %v549
    %621 = vmatpush1.msra.mxu0 %v548
    %622 = vmatprep.subr.mxu0 %v551
    %623 = vmatpush1.msra.mxu0 %v550
    %624 = vmatprep.subr.mxu0 %v553
    %625 = vmatpush1.msra.mxu0 %v552
    %626 = vmatprep.subr.mxu0 %v555
    %627 = vmatpush1.msra.mxu0 %v554
    %628 = vmatprep.subr.mxu0 %v557
    %629 = vmatpush1.msra.mxu0 %v556
    %630 = vmatprep.subr.mxu0 %v559
    %631 = vmatpush1.msra.mxu0 %v558
    %632 = vmatprep.subr.mxu0 %v561
    %633 = vmatpush1.msra.mxu0 %v560
    %634 = vmatprep.mubr.f32.mxu0 %v497
    %635 = vmatmul.mubr.f32.gmra.mrb[0].mxu0 %v496
    %v636 = vpop.f32.mrb[0].mxu0
    %v637 = vadd.f32 %v565, %v636
    %v638 = vpop.f32.mrb[0].mxu0
    %v639 = vadd.f32 %v569, %v638
    %640 = vdwg.mxu0
    %vm641 = vcmask 1041408
    %v642 = vsel %vm641, %v637, 0.0
    %v643 = vsel %vm641, %v639, 0.0
    %v644 = vadd.f32 %v642, %v643
    %645 = vadd.xlane.f32.xlu0 %v644
    %v646 = vpop.xlane.xlu0 %645
    %v647 = vrcp.pop 256.0
    %v648 = vmul.f32 %v646, %v647
    %v649 = vsub.f32 %v637, %v648
    %v650 = vsub.f32 %v639, %v648
    %v651 = vmul.f32 %v649, %v649
    %v652 = vmul.f32 %v650, %v650
    %v653 = vsel %vm641, %v651, 0.0
    %v654 = vsel %vm641, %v652, 0.0
    %v655 = vadd.f32 %v653, %v654
    %656 = vadd.xlane.f32.xlu0 %v655
    %v657 = vpop.xlane.xlu0 %656
    %v658 = vmul.f32 %v657, %v647
    %v659 = vadd.f32 %v658, 1e-05
    %v660 = vrsqrt.pop %v659
    %v661 = vmul.f32 %v649, %v660
    %v662 = vmul.f32 %v650, %v660
    %v663 = vlaneseq
    %v664 = vshrl.u32 %v663, 7
    %v665 = vsub.s32 3, %v664
    %v666 = vrot.slane %v77, %v665
    %v667 = vlaneseq
    %v668 = vshrl.u32 %v667, 7
    %v669 = vsub.s32 3, %v668
    %v670 = vrot.slane %v78, %v669
    %v671 = vmul.f32 %v661, %v666
    %v672 = vmul.f32 %v662, %v670
    %v673 = vlaneseq
    %v674 = vshrl.u32 %v673, 7
    %v675 = vsub.s32 4, %v674
    %v676 = vrot.slane %v77, %v675
    %v677 = vlaneseq
    %v678 = vshrl.u32 %v677, 7
    %v679 = vsub.s32 4, %v678
    %v680 = vrot.slane %v78, %v679
    %v681 = vadd.f32 %v671, %v676
    %v682 = vadd.f32 %v672, %v680
    %vm683 = vcmp.gt.f32.partialorder %v681, 0.0
    %vm684 = vcmp.gt.f32.partialorder %v682, 0.0
    %v685 = vstv %s80
    %v686 = vmul.f32 %v685, %v681
    %v687 = vmul.f32 %v685, %v682
    %v688 = vsel %vm683, %v681, %v686
    %v689 = vsel %vm684, %v682, %v687
    %v690 = vld [vmem:[#allocation6 + $0x20] sm:$0xff]
    %v691 = vld [vmem:[#allocation6 + $0x28] sm:$0xff]
    %v692 = vld [vmem:[#allocation6 + $0x50] sm:$0xff]
    %v693 = vld [vmem:[#allocation6 + $0x58] sm:$0xff]
    %v694 = vld [vmem:[#allocation6 + $0x80] sm:$0xff]
    %v695 = vld [vmem:[#allocation6 + $0x88] sm:$0xff]
    %v696 = vld [vmem:[#allocation6 + $0xb0] sm:$0xff]
    %v697 = vld [vmem:[#allocation6 + $0xb8] sm:$0xff]
    %v698 = vld [vmem:[#allocation6 + $0xe0] sm:$0xff]
    %v699 = vld [vmem:[#allocation6 + $0xe8] sm:$0xff]
    %v700 = vld [vmem:[#allocation6 + $0x110] sm:$0xff]
    %v701 = vld [vmem:[#allocation6 + $0x118] sm:$0xff]
    %v702 = vld [vmem:[#allocation6 + $0x140] sm:$0xff]
    %v703 = vld [vmem:[#allocation6 + $0x148] sm:$0xff]
    %v704 = vld [vmem:[#allocation6 + $0x170] sm:$0xff]
    %v705 = vld [vmem:[#allocation6 + $0x178] sm:$0xff]
    %v706 = vld [vmem:[#allocation6 + $0x1a0] sm:$0xff]
    %v707 = vld [vmem:[#allocation6 + $0x1a8] sm:$0xff]
    %v708 = vld [vmem:[#allocation6 + $0x1d0] sm:$0xff]
    %v709 = vld [vmem:[#allocation6 + $0x1d8] sm:$0xff]
    %v710 = vld [vmem:[#allocation6 + $0x200] sm:$0xff]
    %v711 = vld [vmem:[#allocation6 + $0x208] sm:$0xff]
    %v712 = vld [vmem:[#allocation6 + $0x230] sm:$0xff]
    %v713 = vld [vmem:[#allocation6 + $0x238] sm:$0xff]
    %v714 = vld [vmem:[#allocation6 + $0x260] sm:$0xff]
    %v715 = vld [vmem:[#allocation6 + $0x268] sm:$0xff]
    %v716 = vld [vmem:[#allocation6 + $0x290] sm:$0xff]
    %v717 = vld [vmem:[#allocation6 + $0x298] sm:$0xff]
    %v718 = vld [vmem:[#allocation6 + $0x2c0] sm:$0xff]
    %v719 = vld [vmem:[#allocation6 + $0x2c8] sm:$0xff]
    %v720 = vld [vmem:[#allocation6 + $0x2f0] sm:$0xff]
    %v721 = vld [vmem:[#allocation6 + $0x2f8] sm:$0xff]
    %v722 = vld [vmem:[#allocation6 + $0x320] sm:$0xff]
    %v723 = vld [vmem:[#allocation6 + $0x328] sm:$0xff]
    %v724 = vld [vmem:[#allocation6 + $0x350] sm:$0xff]
    %v725 = vld [vmem:[#allocation6 + $0x358] sm:$0xff]
    %v726 = vld [vmem:[#allocation6 + $0x380] sm:$0xff]
    %v727 = vld [vmem:[#allocation6 + $0x388] sm:$0xff]
    %v728 = vld [vmem:[#allocation6 + $0x3b0] sm:$0xff]
    %v729 = vld [vmem:[#allocation6 + $0x3b8] sm:$0xff]
    %v730 = vld [vmem:[#allocation6 + $0x3e0] sm:$0xff]
    %v731 = vld [vmem:[#allocation6 + $0x3e8] sm:$0xff]
    %v732 = vld [vmem:[#allocation6 + $0x410] sm:$0xff]
    %v733 = vld [vmem:[#allocation6 + $0x418] sm:$0xff]
    %v734 = vld [vmem:[#allocation6 + $0x440] sm:$0xff]
    %v735 = vld [vmem:[#allocation6 + $0x448] sm:$0xff]
    %v736 = vld [vmem:[#allocation6 + $0x470] sm:$0xff]
    %v737 = vld [vmem:[#allocation6 + $0x478] sm:$0xff]
    %v738 = vld [vmem:[#allocation6 + $0x4a0] sm:$0xff]
    %v739 = vld [vmem:[#allocation6 + $0x4a8] sm:$0xff]
    %v740 = vld [vmem:[#allocation6 + $0x4d0] sm:$0xff]
    %v741 = vld [vmem:[#allocation6 + $0x4d8] sm:$0xff]
    %v742 = vld [vmem:[#allocation6 + $0x500] sm:$0xff]
    %v743 = vld [vmem:[#allocation6 + $0x508] sm:$0xff]
    %v744 = vld [vmem:[#allocation6 + $0x530] sm:$0xff]
    %v745 = vld [vmem:[#allocation6 + $0x538] sm:$0xff]
    %v746 = vld [vmem:[#allocation6 + $0x560] sm:$0xff]
    %v747 = vld [vmem:[#allocation6 + $0x568] sm:$0xff]
    %v748 = vld [vmem:[#allocation6 + $0x590] sm:$0xff]
    %v749 = vld [vmem:[#allocation6 + $0x598] sm:$0xff]
    %v750 = vld [vmem:[#allocation6 + $0x5c0] sm:$0xff]
    %v751 = vld [vmem:[#allocation6 + $0x5c8] sm:$0xff]
    %v752 = vld [vmem:[#allocation6 + $0x5f0] sm:$0xff]
    %v753 = vld [vmem:[#allocation6 + $0x5f8] sm:$0xff]
    %v754 = vlaneseq
    %v755 = vshrl.u32 %v754, 7
    %v756 = vsub.s32 5, %v755
    %v757 = vrot.slane %v77, %v756
    %v758 = vlaneseq
    %v759 = vshrl.u32 %v758, 7
    %v760 = vsub.s32 5, %v759
    %v761 = vrot.slane %v78, %v760
    %762 = vmatprep.subr.mxu0 %v691
    %763 = vmatpush1.msra.mxu0 %v690
    %764 = vmatprep.subr.mxu0 %v693
    %765 = vmatpush1.msra.mxu0 %v692
    %766 = vmatprep.subr.mxu0 %v695
    %767 = vmatpush1.msra.mxu0 %v694
    %768 = vmatprep.subr.mxu0 %v697
    %769 = vmatpush1.msra.mxu0 %v696
    %770 = vmatprep.subr.mxu0 %v699
    %771 = vmatpush1.msra.mxu0 %v698
    %772 = vmatprep.subr.mxu0 %v701
    %773 = vmatpush1.msra.mxu0 %v700
    %774 = vmatprep.subr.mxu0 %v703
    %775 = vmatpush1.msra.mxu0 %v702
    %776 = vmatprep.subr.mxu0 %v705
    %777 = vmatpush1.msra.mxu0 %v704
    %778 = vmatprep.subr.mxu0 %v707
    %779 = vmatpush1.msra.mxu0 %v706
    %780 = vmatprep.subr.mxu0 %v709
    %781 = vmatpush1.msra.mxu0 %v708
    %782 = vmatprep.subr.mxu0 %v711
    %783 = vmatpush1.msra.mxu0 %v710
    %784 = vmatprep.subr.mxu0 %v713
    %785 = vmatpush1.msra.mxu0 %v712
    %786 = vmatprep.subr.mxu0 %v715
    %787 = vmatpush1.msra.mxu0 %v714
    %788 = vmatprep.subr.mxu0 %v717
    %789 = vmatpush1.msra.mxu0 %v716
    %790 = vmatprep.subr.mxu0 %v719
    %791 = vmatpush1.msra.mxu0 %v718
    %792 = vmatprep.subr.mxu0 %v721
    %793 = vmatpush1.msra.mxu0 %v720
    %794 = vmatprep.subr.mxu0 %v723
    %795 = vmatpush1.msra.mxu0 %v722
    %796 = vmatprep.subr.mxu0 %v725
    %797 = vmatpush1.msra.mxu0 %v724
    %798 = vmatprep.subr.mxu0 %v727
    %799 = vmatpush1.msra.mxu0 %v726
    %800 = vmatprep.subr.mxu0 %v729
    %801 = vmatpush1.msra.mxu0 %v728
    %802 = vmatprep.subr.mxu0 %v731
    %803 = vmatpush1.msra.mxu0 %v730
    %804 = vmatprep.subr.mxu0 %v733
    %805 = vmatpush1.msra.mxu0 %v732
    %806 = vmatprep.subr.mxu0 %v735
    %807 = vmatpush1.msra.mxu0 %v734
    %808 = vmatprep.subr.mxu0 %v737
    %809 = vmatpush1.msra.mxu0 %v736
    %810 = vmatprep.subr.mxu0 %v739
    %811 = vmatpush1.msra.mxu0 %v738
    %812 = vmatprep.subr.mxu0 %v741
    %813 = vmatpush1.msra.mxu0 %v740
    %814 = vmatprep.subr.mxu0 %v743
    %815 = vmatpush1.msra.mxu0 %v742
    %816 = vmatprep.subr.mxu0 %v745
    %817 = vmatpush1.msra.mxu0 %v744
    %818 = vmatprep.subr.mxu0 %v747
    %819 = vmatpush1.msra.mxu0 %v746
    %820 = vmatprep.subr.mxu0 %v749
    %821 = vmatpush1.msra.mxu0 %v748
    %822 = vmatprep.subr.mxu0 %v751
    %823 = vmatpush1.msra.mxu0 %v750
    %824 = vmatprep.subr.mxu0 %v753
    %825 = vmatpush1.msra.mxu0 %v752
    %826 = vmatprep.mubr.f32.mxu0 %v689
    %827 = vmatmul.mubr.f32.gmra.mrb[0].mxu0 %v688
    %v828 = vpop.f32.mrb[0].mxu0
    %v829 = vadd.f32 %v757, %v828
    %v830 = vpop.f32.mrb[0].mxu0
    %v831 = vadd.f32 %v761, %v830
    %832 = vdwg.mxu0
    %v833 = vmul.f32 %v829, %v829
    %v834 = vmul.f32 %v831, %v831
    %v835 = vsel %vm641, %v833, 0.0
    %v836 = vsel %vm641, %v834, 0.0
    %v837 = vadd.f32 %v835, %v836
    %838 = vadd.xlane.f32.xlu0 %v837
    %v839 = vpop.xlane.xlu0 %838
    %v840 = vrsqrt.pop %v839
    %v841 = vmin.f32 %v840, 1e+12
    %v842 = vmul.f32 %v829, %v841
    %v843 = vmul.f32 %v831, %v841
    %v844 = vld [vmem:[%s4] sm:$0xf]
    %v845 = vmul.f32 %v844, %v844
    %v848 = vunpack.c.l.s4 1983009808
    %v849 = vunpack.c.0.s8 %v848
    %v850 = vlaneseq
    %v851 = vshrl.u32 %v850, 7
    %v852 = vsub.s32 %v849, %v851
    %v853 = vrot.slane %v845, %v852
    %v854 = vcombine.high %v853, %v853
    %v857 = vsel %vm641, %v853, 0.0
    %v858 = vsel %vm641, %v854, 0.0
    %v859 = vadd.f32 %v857, %v858
    %860 = vadd.xlane.f32.xlu0 %v859
    %v861 = vpop.xlane.xlu0 %860
    %v862 = vrsqrt.pop %v861
    %v863 = vmin.f32 %v862, 1e+08
    %v866 = vunpack.c.l.s4 269488144
    %v867 = vunpack.c.0.s8 %v866
    %v868 = vlaneseq
    %v869 = vshrl.u32 %v868, 7
    %v870 = vsub.s32 %v867, %v869
    %v871 = vrot.slane %v863, %v870
    %v873 = vmul.f32 %v844, %v871
    %v876 = vunpack.c.l.s4 1983009808
    %v877 = vunpack.c.0.s8 %v876
    %v878 = vlaneseq
    %v879 = vshrl.u32 %v878, 7
    %v880 = vsub.s32 %v877, %v879
    %v881 = vrot.slane %v873, %v880
    %v882 = vcombine.high %v881, %v881
    %885 = vmatprep.subr.mxu0 %v882
    %886 = vmatpush1.xpose.msra.mxu0 %v881
    %887 = vmatprep.subr.mxu0 0.0
    %888 = vmatpush1.xpose.msra.mxu0 0.0
    %889 = vmatprep.subr.mxu0 0.0
    %890 = vmatpush1.xpose.msra.mxu0 0.0
    %891 = vmatprep.subr.mxu0 0.0
    %892 = vmatpush1.xpose.msra.mxu0 0.0
    %893 = vmatprep.subr.mxu0 0.0
    %894 = vmatpush1.xpose.msra.mxu0 0.0
    %895 = vmatprep.subr.mxu0 0.0
    %896 = vmatpush1.xpose.msra.mxu0 0.0
    %897 = vmatprep.subr.mxu0 0.0
    %898 = vmatpush1.xpose.msra.mxu0 0.0
    %899 = vmatprep.subr.mxu0 0.0
    %900 = vmatpush1.xpose.msra.mxu0 0.0
    %901 = vmatprep.subr.mxu0 0.0
    %902 = vmatpush1.xpose.msra.mxu0 0.0
    %903 = vmatprep.subr.mxu0 0.0
    %904 = vmatpush1.xpose.msra.mxu0 0.0
    %905 = vmatprep.subr.mxu0 0.0
    %906 = vmatpush1.xpose.msra.mxu0 0.0
    %907 = vmatprep.subr.mxu0 0.0
    %908 = vmatpush1.xpose.msra.mxu0 0.0
    %909 = vmatprep.subr.mxu0 0.0
    %910 = vmatpush1.xpose.msra.mxu0 0.0
    %911 = vmatprep.subr.mxu0 0.0
    %912 = vmatpush1.xpose.msra.mxu0 0.0
    %913 = vmatprep.subr.mxu0 0.0
    %914 = vmatpush1.xpose.msra.mxu0 0.0
    %915 = vmatprep.subr.mxu0 0.0
    %916 = vmatpush1.xpose.msra.mxu0 0.0
    %917 = vmatprep.subr.mxu0 0.0
    %918 = vmatpush1.xpose.msra.mxu0 0.0
    %919 = vmatprep.subr.mxu0 0.0
    %920 = vmatpush1.xpose.msra.mxu0 0.0
    %921 = vmatprep.subr.mxu0 0.0
    %922 = vmatpush1.xpose.msra.mxu0 0.0
    %923 = vmatprep.subr.mxu0 0.0
    %924 = vmatpush1.xpose.msra.mxu0 0.0
    %925 = vmatprep.subr.mxu0 0.0
    %926 = vmatpush1.xpose.msra.mxu0 0.0
    %927 = vmatprep.subr.mxu0 0.0
    %928 = vmatpush1.xpose.msra.mxu0 0.0
    %929 = vmatprep.subr.mxu0 0.0
    %930 = vmatpush1.xpose.msra.mxu0 0.0
    %931 = vmatprep.subr.mxu0 0.0
    %932 = vmatpush1.xpose.msra.mxu0 0.0
    %933 = vmatprep.subr.mxu0 0.0
    %934 = vmatpush1.xpose.msra.mxu0 0.0
    %935 = vmatprep.subr.mxu0 0.0
    %936 = vmatpush1.xpose.msra.mxu0 0.0
    %937 = vmatprep.subr.mxu0 0.0
    %938 = vmatpush1.xpose.msra.mxu0 0.0
    %939 = vmatprep.subr.mxu0 0.0
    %940 = vmatpush1.xpose.msra.mxu0 0.0
    %941 = vmatprep.subr.mxu0 0.0
    %942 = vmatpush1.xpose.msra.mxu0 0.0
    %943 = vmatprep.subr.mxu0 0.0
    %944 = vmatpush1.xpose.msra.mxu0 0.0
    %945 = vmatprep.subr.mxu0 0.0
    %946 = vmatpush1.xpose.msra.mxu0 0.0
    %947 = vmatprep.subr.mxu0 0.0
    %948 = vmatpush1.xpose.msra.mxu0 0.0
    %949 = vmatprep.mubr.f32.mxu0 %v843
    %950 = vmatmul.mubr.f32.gmra.mrb[0].mxu0 %v842
    %v951 = vpop.f32.mrb[0].mxu0
    %v952 = vadd.f32 0.0, %v951
    %v953 = vpop.f32.mrb[0].mxu0
    %954 = vdwg.mxu0
    %vm955 = vcmask 9216
    %v956 = vsel %vm955, %v952, -inf
    %957 = vmax.xlane.f32.xlu0 %v956
    %v958 = vpop.xlane.xlu0 %957
    %vm959 = vcmp.ge.f32.partialorder %v952, %v958
    %v960 = vsel %vm959, %v258, 2
    %v961 = vsel %vm955, %v960, 2147483647
    %v962 = vand.u32 %v961, 65535
    %v963 = vshra.s32 %v961, 16
    %v964 = vcvt.s32.f32 %v962
    %v965 = vcvt.s32.f32 %v963
    %966 = vmin.xlane.f32.xlu0 %v965
    %v967 = vpop.xlane.xlu0 %966
    %vm968 = vcmp.eq.f32.partialorder %v965, %v967
    %v969 = vsel %vm968, %v964, inf
    %970 = vmin.xlane.f32.xlu0 %v969
    %v971 = vpop.xlane.xlu0 %970
    %v972 = vcvt.f32.s32 %v971
    %v973 = vcvt.f32.s32 %v967
    %v974 = vshll.u32 %v973, 16
    %v975 = vadd.s32 %v974, %v972
    %v976 = vsel %vm641, %v958, 0.0
    %v977 = vcvt.s32.f32 %v975
    %v978 = vsel %vm641, %v977, 0.0
    %vm979 = vcmp.eq.s32.totalorder %v258, 0
    %vm980 = vcmp.eq.s32.totalorder %v258, 1
    %982 = vset.pattern.permute.xlu0 0
    %983 = vperm.xlu0 %982, %v978
    %v984 = vpop.permute.xlu0 %983
    %v986 = vsel %vm980, %v984, 0.0
    %988 = vset.pattern.permute.xlu0 0
    %989 = vperm.xlu0 %988, %v976
    %v990 = vpop.permute.xlu0 %989
    %v992 = vsel %vm979, %v990, %v986
    %993 = vst [vmem:[#allocation10] sm:$0xff] %v992
    // Predicated region
    $region38: #{tpu_custom_call.1} parent=1 // pred_check
      _
    $region39: #{tpu_custom_call.1} parent=1 // pred_check_branch
      %995 = sbr.rel (0) target = $region41
    $region40: #{tpu_custom_call.1} parent=1 // pred_region
      %s997 = ssub.s32 128, 128
      %998 = vsyncadd [#allocation4], %s997
      %s1000 = sshll.u32 [#allocation10], 4
      %s1001 = int_to_ptr.vmem [resolvable:$true] %s1000
      %1003 = dma.vmem_to_hbm [thread:$0]  %s1001, 128, %s5, [#allocation4]
    $region41: #{tpu_custom_call.1} parent=1 // pred_fallthru
      _
    // Predicated region
    $region42: #{tpu_custom_call.1} parent=1 // pred_check
      _
    $region43: #{tpu_custom_call.1} parent=1 // pred_check_branch
      %1005 = sbr.rel (0) target = $region45
    $region44: #{tpu_custom_call.1} parent=1 // pred_region
      %1006 = dma.done [#allocation4], 128
    $region45: #{tpu_custom_call.1} parent=1 // pred_fallthru
      _
    %1007 = vsyncpa [#allocation3], 1
    %1008 = vsyncpa [#allocation7], 1
    %1009 = vsyncpa [#allocation4], 1
    %1010 = vsyncpa [#allocation5], 1

</llo_original>
